<compile_context>
chip_gen: v7x
topology: tpu7x:2x2x1
jax: 0.10.0
libtpu: 0.0.40
codegen_flags: <defaults>
</compile_context>

<pallas_src>
import functools

import jax
import jax.numpy as jnp
from jax import lax
from jax.experimental import pallas as pl
from jax.experimental.pallas import tpu as pltpu


def _meta_model_kernel(x_ref, w_ref, b_ref, o_ref, *, slabs_per_step):
    # x_ref: (NB, B, F)   NB slabs folded into this grid step
    # w_ref: (M, F)       nn.Linear weight, resident in VMEM across steps
    # b_ref: (M, 1)       bias (f32)
    # o_ref: (NB, M, B)   lane-dense output (B on the 128-lane axis)
    w = w_ref[...]
    b = b_ref[...].astype(jnp.float32)

    for i in range(slabs_per_step):                 # NB is tiny & static
        x_i = x_ref[i]                              # (B, F)
        # Contract F of both operands: (M,F) x (B,F) -> (M,B).  B is lane-dense,
        # so the result is a single f32 vreg and all softmax work is ~1 vreg-op.
        y = lax.dot_general(
            w, x_i,
            dimension_numbers=(((1,), (1,)), ((), ())),
            preferred_element_type=jnp.float32,
        ) + b                                        # (M, B) f32

        # Softmax over the original dim=0 (batch) == the lane axis here.
        m = jnp.max(y, axis=-1, keepdims=True)       # (M, 1)   XLU reduce
        e = jnp.exp(y - m)                           # (M, B)   EUP
        s = jnp.sum(e, axis=-1, keepdims=True)       # (M, 1)
        o_ref[i] = (e / s).astype(o_ref.dtype)       # exact normalization


def meta_model_forward(x, weight, bias, *, output_layout="bm"):
    """MetaModel forward.

    x:      (B, F) or (N, B, F)  — N independent MetaModel input slabs.
    weight: (num_models, F)      — PyTorch nn.Linear layout (out_features, in_features).
    bias:   (num_models,)
    output_layout:
      "bm" (default): (B, M) / (N, B, M)  — matches the PyTorch module contract.
      "mb":           (M, B) / (N, M, B)  — the kernel's native lane-dense layout
                                            (no post-transpose; preferred for fused consumers).
    Softmax is over the B axis of each slab, exactly nn.Softmax(dim=0) on a 2D activation.
    """
    squeeze = x.ndim == 2
    if squeeze:
        x = x[None]
    N, B, F = x.shape
    M = weight.shape[0]
    assert weight.shape == (M, F) and bias.shape == (M,)

    # Fold slabs: at most 2 grid steps.  2 steps shard across both v7x TCs;
    # on single-TC v5e/v6e the extra step costs ~0.35 us — negligible.
    steps = 2 if (N >= 2 and N % 2 == 0) else 1
    nb = N // steps

    # Compute dtype follows x (no wrapper-side cast of x — producer decides).
    w = weight.astype(x.dtype)                       # tiny (M*F elements)
    b2d = bias.astype(jnp.float32).reshape(M, 1)

    itemsize = jnp.dtype(x.dtype).itemsize
    cost = pl.CostEstimate(
        flops=2 * N * B * F * M,
        transcendentals=N * B * M,
        bytes_accessed=(N * B * F * itemsize + M * F * itemsize
                        + M * 4 + N * M * B * 4),
    )

    # VMEM guard: double-buffered x/out blocks + resident weight/bias.
    vmem_needed = (2 * nb * B * F * itemsize + 2 * nb * M * B * 4
                   + M * F * itemsize + M * 4)
    vmem_limit = None
    if vmem_needed > 30 * 1024 * 1024:
        vmem_limit = min(int(1.2 * vmem_needed) + (1 << 20), 100 * 1024 * 1024)
    # TODO(synk): if a single (B, F) slab ever outgrows VMEM, tile F over a
    # trailing "arbitrary" grid axis with an f32 accumulator; B must stay
    # untiled (softmax reduces over B), or switch to an online softmax over B.

    out_mb = pl.pallas_call(
        functools.partial(_meta_model_kernel, slabs_per_step=nb),
        out_shape=jax.ShapeDtypeStruct((N, M, B), jnp.float32),
        grid=(steps,),
        in_specs=[
            pl.BlockSpec((nb, B, F), lambda g: (g, 0, 0)),   # nb full slabs / step
            pl.BlockSpec((M, F), lambda g: (0, 0)),          # weight: resident
            pl.BlockSpec((M, 1), lambda g: (0, 0)),          # bias:   resident
        ],
        out_specs=pl.BlockSpec((nb, M, B), lambda g: (g, 0, 0)),  # lane-dense store
        compiler_params=pltpu.CompilerParams(
            dimension_semantics=("parallel",),
            vmem_limit_bytes=vmem_limit,
        ),
        cost_estimate=cost,
    )(x, w, b2d)

    if output_layout == "mb":
        out = out_mb                                  # (N, M, B) lane-dense
    else:
        out = jnp.swapaxes(out_mb, 1, 2)              # (N, B, M): module contract (tiny transpose)
    return out[0] if squeeze else out


def reference_forward(x, weight, bias):
    y = x @ weight.T + bias[None, :]
    y = y - jnp.max(y, axis=0, keepdims=True)
    e = jnp.exp(y)
    return e / jnp.sum(e, axis=0, keepdims=True)


if __name__ == "__main__":
    # Shapes consistent with the module (F = num_models * task_vector_dim).
    num_models = 8
    task_vector_dim = 16
    F = num_models * task_vector_dim     # 128 (lane-aligned contraction dim)
    B = 128                              # batch of task vectors
    N = 4                                # independent MetaModel slabs

    key = jax.random.PRNGKey(0)
    kx, kw, kb = jax.random.split(key, 3)

    # Mimic nn.Linear's uniform(-1/sqrt(F), 1/sqrt(F)) init, deterministically.
    bound = 1.0 / (F ** 0.5)
    weight = jax.random.uniform(kw, (num_models, F), jnp.float32, -bound, bound)
    bias = jax.random.uniform(kb, (num_models,), jnp.float32, -bound, bound)
    x_stack = jax.random.normal(kx, (N, B, F), jnp.float32)

    # --- Batched f32 path (2 grid steps x 2 slabs) ----------------------------
    out_stack = jax.block_until_ready(meta_model_forward(x_stack, weight, bias))
    ref_stack = jax.vmap(lambda xs: reference_forward(xs, weight, bias))(x_stack)
    assert out_stack.shape == (N, B, num_models)
    assert jnp.allclose(out_stack, ref_stack, atol=2e-3, rtol=2e-3), "stacked mismatch"
    # Exact normalization: every softmax column sums to 1.
    assert jnp.allclose(jnp.sum(out_stack, axis=1),
                        jnp.ones((N, num_models)), atol=1e-4)

    # --- Plain single-instance call, exactly the PyTorch forward signature ----
    x_single = x_stack[0]
    out_single = jax.block_until_ready(meta_model_forward(x_single, weight, bias))
    assert out_single.shape == (B, num_models)
    assert jnp.allclose(out_single, reference_forward(x_single, weight, bias),
                        atol=2e-3, rtol=2e-3), "single mismatch"

    # --- Lane-dense native layout for consumers that can read it transposed ---
    out_mb = jax.block_until_ready(
        meta_model_forward(x_stack, weight, bias, output_layout="mb"))
    assert out_mb.shape == (N, num_models, B)
    assert jnp.allclose(jnp.swapaxes(out_mb, 1, 2), ref_stack, atol=2e-3, rtol=2e-3)

    # --- bf16 path: x produced in bf16 upstream (no wrapper-side cast) --------
    x_bf16 = jax.random.normal(kx, (N, B, F), jnp.bfloat16)
    out_bf16 = jax.block_until_ready(meta_model_forward(x_bf16, weight, bias))
    ref_bf16 = jax.vmap(
        lambda xs: reference_forward(xs.astype(jnp.float32), weight, bias))(x_bf16)
    assert out_bf16.dtype == jnp.float32
    assert jnp.allclose(out_bf16, ref_bf16, atol=3e-2, rtol=3e-2), "bf16 mismatch"

    print("KERNEL_OK")
</pallas_src>

<mosaic_0001>
module attributes {stable_mosaic.version = 11 : i64} {
  func.func @_meta_model_kernel(%arg0: i32, %arg1: memref<2x128x128xf32, #tpu.memory_space<vmem>>, %arg2: memref<8x128xf32, #tpu.memory_space<vmem>>, %arg3: memref<8x1xf32, #tpu.memory_space<vmem>>, %arg4: memref<2x8x128xf32, #tpu.memory_space<vmem>>) attributes {dimension_semantics = [#tpu.dimension_semantics<parallel>], iteration_bounds = array<i64: 2>, scalar_prefetch = 0 : i64, scratch_operands = 0 : i64, tpu.core_type = #tpu.core_type<tc>, window_params = [{transform_indices = @transform_0, window_bounds = array<i64: 2, 128, 128>}, {pipeline_mode = #tpu.pipeline_mode<synchronous>, transform_indices = @transform_1, window_bounds = array<i64: 8, 128>}, {pipeline_mode = #tpu.pipeline_mode<synchronous>, transform_indices = @transform_2, window_bounds = array<i64: 8, 1>}, {transform_indices = @transform_3, window_bounds = array<i64: 2, 8, 128>}]} {
    %c0 = arith.constant 0 : index
    %c0_0 = arith.constant 0 : index
    %0 = vector.load %arg2[%c0, %c0_0] : memref<8x128xf32, #tpu.memory_space<vmem>>, vector<8x128xf32>
    %c0_1 = arith.constant 0 : index
    %c0_2 = arith.constant 0 : index
    %1 = vector.load %arg3[%c0_1, %c0_2] : memref<8x1xf32, #tpu.memory_space<vmem>>, vector<8x1xf32>
    %c0_3 = arith.constant 0 : index
    %c0_4 = arith.constant 0 : index
    %c0_5 = arith.constant 0 : index
    %2 = vector.load %arg1[%c0_3, %c0_4, %c0_5] : memref<2x128x128xf32, #tpu.memory_space<vmem>>, vector<1x128x128xf32>
    %3 = vector.shape_cast %2 : vector<1x128x128xf32> to vector<128x128xf32>
    %cst = arith.constant dense<0.000000e+00> : vector<8x128xf32>
    %4 = tpu.matmul %0, %3, %cst {dimension_numbers = #tpu.dot_dimension_numbers<[1], [1], [0], [0], [0, 0, 1, 0], [], []>} : vector<8x128xf32>, vector<128x128xf32>, vector<8x128xf32> -> vector<8x128xf32>
    %5 = vector.broadcast %1 : vector<8x1xf32> to vector<8x128xf32>
    %6 = arith.addf %4, %5 : vector<8x128xf32>
    %cst_6 = arith.constant dense<0xFF800000> : vector<8xf32>
    %7 = vector.multi_reduction <maximumf>, %6, %cst_6 [1] : vector<8x128xf32> to vector<8xf32>
    %8 = vector.shape_cast %7 : vector<8xf32> to vector<8x1xf32>
    %9 = vector.broadcast %8 : vector<8x1xf32> to vector<8x128xf32>
    %10 = arith.subf %6, %9 : vector<8x128xf32>
    %11 = math.exp %10 : vector<8x128xf32>
    %cst_7 = arith.constant dense<0.000000e+00> : vector<8xf32>
    %12 = vector.multi_reduction <add>, %11, %cst_7 [1] : vector<8x128xf32> to vector<8xf32>
    %13 = vector.shape_cast %12 : vector<8xf32> to vector<8x1xf32>
    %14 = vector.broadcast %13 : vector<8x1xf32> to vector<8x128xf32>
    %15 = arith.divf %11, %14 : vector<8x128xf32>
    %c0_8 = arith.constant 0 : index
    %c0_9 = arith.constant 0 : index
    %c0_10 = arith.constant 0 : index
    %16 = vector.load %arg4[%c0_8, %c0_9, %c0_10] : memref<2x8x128xf32, #tpu.memory_space<vmem>>, vector<1x8x128xf32>
    %17 = vector.shape_cast %16 : vector<1x8x128xf32> to vector<8x128xf32>
    %18 = vector.shape_cast %15 : vector<8x128xf32> to vector<1x8x128xf32>
    tpu.vector_store %arg4[%c0_8, %c0_9, %c0_10], %18 {strides = array<i32>} : memref<2x8x128xf32, #tpu.memory_space<vmem>>, vector<1x8x128xf32>,
    %c1 = arith.constant 1 : index
    %c0_11 = arith.constant 0 : index
    %c0_12 = arith.constant 0 : index
    %19 = vector.load %arg1[%c1, %c0_11, %c0_12] : memref<2x128x128xf32, #tpu.memory_space<vmem>>, vector<1x128x128xf32>
    %20 = vector.shape_cast %19 : vector<1x128x128xf32> to vector<128x128xf32>
    %cst_13 = arith.constant dense<0.000000e+00> : vector<8x128xf32>
    %21 = tpu.matmul %0, %20, %cst_13 {dimension_numbers = #tpu.dot_dimension_numbers<[1], [1], [0], [0], [0, 0, 1, 0], [], []>} : vector<8x128xf32>, vector<128x128xf32>, vector<8x128xf32> -> vector<8x128xf32>
    %22 = vector.broadcast %1 : vector<8x1xf32> to vector<8x128xf32>
    %23 = arith.addf %21, %22 : vector<8x128xf32>
    %cst_14 = arith.constant dense<0xFF800000> : vector<8xf32>
    %24 = vector.multi_reduction <maximumf>, %23, %cst_14 [1] : vector<8x128xf32> to vector<8xf32>
    %25 = vector.shape_cast %24 : vector<8xf32> to vector<8x1xf32>
    %26 = vector.broadcast %25 : vector<8x1xf32> to vector<8x128xf32>
    %27 = arith.subf %23, %26 : vector<8x128xf32>
    %28 = math.exp %27 : vector<8x128xf32>
    %cst_15 = arith.constant dense<0.000000e+00> : vector<8xf32>
    %29 = vector.multi_reduction <add>, %28, %cst_15 [1] : vector<8x128xf32> to vector<8xf32>
    %30 = vector.shape_cast %29 : vector<8xf32> to vector<8x1xf32>
    %31 = vector.broadcast %30 : vector<8x1xf32> to vector<8x128xf32>
    %32 = arith.divf %28, %31 : vector<8x128xf32>
    %c1_16 = arith.constant 1 : index
    %c0_17 = arith.constant 0 : index
    %c0_18 = arith.constant 0 : index
    %33 = vector.load %arg4[%c1_16, %c0_17, %c0_18] : memref<2x8x128xf32, #tpu.memory_space<vmem>>, vector<1x8x128xf32>
    %34 = vector.shape_cast %33 : vector<1x8x128xf32> to vector<8x128xf32>
    %35 = vector.shape_cast %32 : vector<8x128xf32> to vector<1x8x128xf32>
    tpu.vector_store %arg4[%c1_16, %c0_17, %c0_18], %35 {strides = array<i32>} : memref<2x8x128xf32, #tpu.memory_space<vmem>>, vector<1x8x128xf32>,
    return
  }
  func.func @transform_0(%arg0: i32) -> (i32, i32, i32) {
    %c0_i32 = arith.constant 0 : i32
    %c0_i32_0 = arith.constant 0 : i32
    %c0_i32_1 = arith.constant 0 : i32
    return %arg0, %c0_i32, %c0_i32_0 : i32, i32, i32
  }
  func.func @transform_1(%arg0: i32) -> (i32, i32) {
    %c0_i32 = arith.constant 0 : i32
    %c0_i32_0 = arith.constant 0 : i32
    %c0_i32_1 = arith.constant 0 : i32
    return %c0_i32, %c0_i32_0 : i32, i32
  }
  func.func @transform_2(%arg0: i32) -> (i32, i32) {
    %c0_i32 = arith.constant 0 : i32
    %c0_i32_0 = arith.constant 0 : i32
    %c0_i32_1 = arith.constant 0 : i32
    return %c0_i32, %c0_i32_0 : i32, i32
  }
  func.func @transform_3(%arg0: i32) -> (i32, i32, i32) {
    %c0_i32 = arith.constant 0 : i32
    %c0_i32_0 = arith.constant 0 : i32
    %c0_i32_1 = arith.constant 0 : i32
    return %arg0, %c0_i32, %c0_i32_0 : i32, i32, i32
  }
}

</mosaic_0001>

<llo_original>
// kernel: tpu_custom_call.1
$region0: #{tpu_custom_call.1}
  #allocation0 [shape = 'u32[]', space=smem, size = 0x4, offset = 0x4, fixed_abs, tag = 'smem constant byte address 0x4 - core index']
  #allocation1 [shape = 'u32[144,128]{1,0:T(1,128)}', space=vmem, size = 0x12000, scoped, tag = 'internal scratch']
  %s0 = inlined_call_operand.hbm [shape: f32[4,128,128], index: 0, kind: input, shape index: {}]
  %s1 = inlined_call_operand.vmem [shape: f32[8,128], index: 1, kind: input, shape index: {}]
  %s2 = inlined_call_operand.vmem [shape: f32[8,1], index: 2, kind: input, shape index: {}]
  %s3 = inlined_call_operand.hbm [shape: f32[4,8,128], index: 3, kind: output, shape index: {}]
  %s4 = sld [smem:[#allocation0]]
  $region49: #{tpu_custom_call.1} parent=0
    _
  %s6 = ssub.s32 1, %s4
  %s7 = scalar_select 0, %s6, %s4
  $region1: #{tpu_custom_call.1} parent=0
    #allocation2 [shape = 'u8[262144]{0}', space=vmem, size = 0x40000, scoped, tag = 'input window, operand 0']
    #allocation3 [shape = 's32[2]{0}', space=sflag, size = 0x8, scoped, tag = 'scoped memory for tpu_custom_call.1']
    #allocation4 [shape = 's32[2]{0}', space=sflag, size = 0x8, scoped, tag = 'scoped memory for tpu_custom_call.1']
    #allocation5 [shape = 'u8[16384]{0}', space=vmem, size = 0x4000, scoped, tag = 'output window, operand 0']
    %8 = vsyncpa [#allocation3], 0
    %s9 = scalar_lea.sflag [#allocation3], 1
    %10 = vsyncpa %s9, 0
    %11 = vsyncpa [#allocation4], 0
    %s12 = scalar_lea.sflag [#allocation4], 1
    %13 = vsyncpa %s12, 0
    loop: start=0, step=1, limit=4
    $region2: #{tpu_custom_call.1} parent=1 // loop_pre_header
      _
    $region3: #{tpu_custom_call.1} parent=1 // loop_header
      %s15 = sphi 0, %s19
      %p16 = scmp.ge.s32.totalorder %s15, 4
      %s25 = sphi 0, %s27
      %s28 = sphi 0, %s25
      %s29 = sphi 0, %s28
      %s45 = sphi 0, %s29
      %s49 = sphi 0, %s49
      %s51 = sphi 0, %s49
      %s52 = sphi 0, %s51
      %s66 = sphi 0, %s52
      %s70 = sphi 0, %s70
      %s72 = sphi 0, %s70
      %s73 = sphi 0, %s72
      %s87 = sphi 0, %s73
      %s93 = sphi 0, %s95
      %s96 = sphi 0, %s93
      %s97 = sphi 0, %s96
      %s113 = sphi 0, %s97
    $region4: #{tpu_custom_call.1} parent=1 // loop_header_branch
      %18 = sbr.rel (%p16) target = $region8
    $region5: #{tpu_custom_call.1} parent=1 // loop_body
      %s20 = ssub.s32 %s15, 1
      %s21 = ssub.s32 %s15, 2
      %s22 = sadd.s32 %s15, 1
      %s23 = ssub.s32 %s15, %s22
      %p24 = scmp.eq.s32.totalorder %s23, 0
      %s26 = sadd.s32 %s25, 1
      %s27 = scalar_select %p24, %s25, %s26
      %p30 = pneg %p24
      %p31 = scmp.eq.s32.totalorder %s15, 1
      %p32 = por %p30, %p31
      %p33 = scmp.ne.s32.totalorder %s25, %s28
      %p34 = scmp.eq.s32.totalorder %s15, 0
      %p35 = por %p33, %p34
      %p36 = scmp.ne.s32.totalorder %s25, %s28
      %p37 = scmp.eq.s32.totalorder %s20, 1
      %p38 = por %p36, %p37
      %p39 = scmp.ne.s32.totalorder %s28, %s29
      %p40 = scmp.eq.s32.totalorder %s20, 0
      %p41 = por %p39, %p40
      %p42 = scmp.ne.s32.totalorder %s28, %s29
      %p43 = scmp.eq.s32.totalorder %s21, 1
      %p44 = por %p42, %p43
      %p46 = scmp.ne.s32.totalorder %s29, %s45
      %p47 = scmp.eq.s32.totalorder %s21, 0
      %p48 = por %p46, %p47
      %s50 = sadd.s32 %s49, 1
      %p53 = scmp.eq.s32.totalorder %s15, 1
      %p54 = scmp.ne.s32.totalorder %s49, %s51
      %p55 = scmp.eq.s32.totalorder %s15, 0
      %p56 = por %p54, %p55
      %p57 = scmp.ne.s32.totalorder %s49, %s51
      %p58 = scmp.eq.s32.totalorder %s20, 1
      %p59 = por %p57, %p58
      %p60 = scmp.ne.s32.totalorder %s51, %s52
      %p61 = scmp.eq.s32.totalorder %s20, 0
      %p62 = por %p60, %p61
      %p63 = scmp.ne.s32.totalorder %s51, %s52
      %p64 = scmp.eq.s32.totalorder %s21, 1
      %p65 = por %p63, %p64
      %p67 = scmp.ne.s32.totalorder %s52, %s66
      %p68 = scmp.eq.s32.totalorder %s21, 0
      %p69 = por %p67, %p68
      %s71 = sadd.s32 %s70, 1
      %p74 = scmp.eq.s32.totalorder %s15, 1
      %p75 = scmp.ne.s32.totalorder %s70, %s72
      %p76 = scmp.eq.s32.totalorder %s15, 0
      %p77 = por %p75, %p76
      %p78 = scmp.ne.s32.totalorder %s70, %s72
      %p79 = scmp.eq.s32.totalorder %s20, 1
      %p80 = por %p78, %p79
      %p81 = scmp.ne.s32.totalorder %s72, %s73
      %p82 = scmp.eq.s32.totalorder %s20, 0
      %p83 = por %p81, %p82
      %p84 = scmp.ne.s32.totalorder %s72, %s73
      %p85 = scmp.eq.s32.totalorder %s21, 1
      %p86 = por %p84, %p85
      %p88 = scmp.ne.s32.totalorder %s73, %s87
      %p89 = scmp.eq.s32.totalorder %s21, 0
      %p90 = por %p88, %p89
      %s91 = ssub.s32 %s15, %s22
      %p92 = scmp.eq.s32.totalorder %s91, 0
      %s94 = sadd.s32 %s93, 1
      %s95 = scalar_select %p92, %s93, %s94
      %p98 = pneg %p92
      %p99 = scmp.eq.s32.totalorder %s15, 1
      %p100 = por %p98, %p99
      %p101 = scmp.ne.s32.totalorder %s93, %s96
      %p102 = scmp.eq.s32.totalorder %s15, 0
      %p103 = por %p101, %p102
      %p104 = scmp.ne.s32.totalorder %s93, %s96
      %p105 = scmp.eq.s32.totalorder %s20, 1
      %p106 = por %p104, %p105
      %p107 = scmp.ne.s32.totalorder %s96, %s97
      %p108 = scmp.eq.s32.totalorder %s20, 0
      %p109 = por %p107, %p108
      %p110 = scmp.ne.s32.totalorder %s96, %s97
      %p111 = scmp.eq.s32.totalorder %s21, 1
      %p112 = por %p110, %p111
      %p114 = scmp.ne.s32.totalorder %s97, %s113
      %p115 = scmp.eq.s32.totalorder %s21, 0
      %p116 = por %p114, %p115
      %p117 = scmp.le.s32.totalorder 1, %s15
      %p118 = scmp.lt.s32.totalorder %s15, 3
      %p119 = pnand %p117, %p118
      %p120 = pneg %p119
      // Predicated region
      $region9: #{tpu_custom_call.1} parent=5 // pred_check
        _
      $region10: #{tpu_custom_call.1} parent=5 // pred_check_branch
        %122 = sbr.rel (%p119) target = $region12
      $region11: #{tpu_custom_call.1} parent=5 // pred_region
        %s123 = ssub.s32 %s15, 1
        // Predicated region
        $region13: #{tpu_custom_call.1} parent=11 // pred_check
          %p124 = pneg %p62
        $region14: #{tpu_custom_call.1} parent=11 // pred_check_branch
          %126 = sbr.rel (%p124) target = $region16
        $region15: #{tpu_custom_call.1} parent=11 // pred_region
          _
        $region16: #{tpu_custom_call.1} parent=11 // pred_fallthru
          _
        // Predicated region
        $region17: #{tpu_custom_call.1} parent=11 // pred_check
          %p127 = pneg %p83
        $region18: #{tpu_custom_call.1} parent=11 // pred_check_branch
          %129 = sbr.rel (%p127) target = $region20
        $region19: #{tpu_custom_call.1} parent=11 // pred_region
          _
        $region20: #{tpu_custom_call.1} parent=11 // pred_fallthru
          _
      $region12: #{tpu_custom_call.1} parent=5 // pred_fallthru
        _
      %p130 = scmp.lt.s32.totalorder %s15, 2
      // Predicated region
      $region21: #{tpu_custom_call.1} parent=5 // pred_check
        %p131 = pneg %p130
      $region22: #{tpu_custom_call.1} parent=5 // pred_check_branch
        %133 = sbr.rel (%p131) target = $region24
      $region23: #{tpu_custom_call.1} parent=5 // pred_region
        // Predicated region
        $region25: #{tpu_custom_call.1} parent=23 // pred_check
          %p134 = pneg %p35
        $region26: #{tpu_custom_call.1} parent=23 // pred_check_branch
          %136 = sbr.rel (%p134) target = $region28
        $region27: #{tpu_custom_call.1} parent=23 // pred_region
          %s137 = sand.u32 %s25, 1
          %s138 = scalar_lea.sflag [#allocation3], %s137
          %s139 = sand.u32 %s25, 1
          %s140 = smul.addr %s139, 256
          %s141 = scalar_lea.vmem [#allocation2], %s140
          %s142 = smul.u32 2, %s15
          %s144 = ssub.s32 4096, 4096
          %145 = vsyncadd %s138, %s144
          %s146 = smul.addr %s142, 16
          %s147 = smul.addr %s146, 128
          %s148 = scalar_lea.hbm %s0, %s147
          %s149 = sshll.u32 %s141, 4
          %s150 = int_to_ptr.vmem [resolvable:$true] %s149
          %155 = dma.hbm_to_vmem [thread:$0]  %s148, 4096, %s150, %s138, 128, 128, 8
        $region28: #{tpu_custom_call.1} parent=23 // pred_fallthru
          _
      $region24: #{tpu_custom_call.1} parent=5 // pred_fallthru
        _
      %p156 = scmp.le.s32.totalorder 1, %s15
      %p157 = scmp.lt.s32.totalorder %s15, 3
      %p158 = pnand %p156, %p157
      %p159 = pneg %p158
      // Predicated region
      $region29: #{tpu_custom_call.1} parent=5 // pred_check
        _
      $region30: #{tpu_custom_call.1} parent=5 // pred_check_branch
        %161 = sbr.rel (%p158) target = $region32
      $region31: #{tpu_custom_call.1} parent=5 // pred_region
        %s162 = ssub.s32 %s15, 1
        %s163 = sand.u32 %s28, 1
        %s164 = scalar_lea.sflag [#allocation3], %s163
        %s165 = sand.u32 %s28, 1
        %s166 = smul.addr %s165, 256
        %s167 = scalar_lea.vmem [#allocation2], %s166
        // Predicated region
        $region33: #{tpu_custom_call.1} parent=31 // pred_check
          %p168 = pneg %p41
        $region34: #{tpu_custom_call.1} parent=31 // pred_check_branch
          %170 = sbr.rel (%p168) target = $region36
        $region35: #{tpu_custom_call.1} parent=31 // pred_region
          %171 = dma.done %s164, 4096
        $region36: #{tpu_custom_call.1} parent=31 // pred_fallthru
          _
        %s172 = sand.u32 %s28, 1
        %s173 = scalar_lea.sflag [#allocation3], %s172
        %s174 = sand.u32 %s28, 1
        %s175 = smul.addr %s174, 256
        %s176 = scalar_lea.vmem [#allocation2], %s175
        %p177 = pneg %p41
        %p178 = pneg %p38
        %p179 = pneg %p62
        %p180 = pneg %p59
        %p181 = pneg %p83
        %p182 = pneg %p80
        %p183 = pneg %p109
        %p184 = pneg %p106
        %s185 = sand.u32 %s96, 1
        %s186 = scalar_lea.sflag [#allocation4], %s185
        %s187 = sand.u32 %s96, 1
        %s188 = smul.addr %s187, 16
        %s189 = scalar_lea.vmem [#allocation5], %s188
        %s190 = smul.u32 2, %s20
        %s191 = smul.u32 2, %s20
        %v192 = vld [vmem:[%s1] sm:$0xff]
        %v193 = vld [vmem:[%s2] sm:$0xff]
        %v194 = vld [vmem:[%s167] sm:$0xff]
        %v195 = vld [vmem:[%s167 + $0x8] sm:$0xff]
        %v196 = vld [vmem:[%s167 + $0x10] sm:$0xff]
        %v197 = vld [vmem:[%s167 + $0x18] sm:$0xff]
        %v198 = vld [vmem:[%s167 + $0x20] sm:$0xff]
        %v199 = vld [vmem:[%s167 + $0x28] sm:$0xff]
        %v200 = vld [vmem:[%s167 + $0x30] sm:$0xff]
        %v201 = vld [vmem:[%s167 + $0x38] sm:$0xff]
        %v202 = vld [vmem:[%s167 + $0x40] sm:$0xff]
        %v203 = vld [vmem:[%s167 + $0x48] sm:$0xff]
        %v204 = vld [vmem:[%s167 + $0x50] sm:$0xff]
        %v205 = vld [vmem:[%s167 + $0x58] sm:$0xff]
        %v206 = vld [vmem:[%s167 + $0x60] sm:$0xff]
        %v207 = vld [vmem:[%s167 + $0x68] sm:$0xff]
        %v208 = vld [vmem:[%s167 + $0x70] sm:$0xff]
        %v209 = vld [vmem:[%s167 + $0x78] sm:$0xff]
        %211 = vset.pattern.permute.xlu0 0
        %212 = vperm.xlu0 %211, %v193
        %v213 = vpop.permute.xlu0 %212
        %215 = vmatprep.subr.mxu0 0.0
        %216 = vmatpush1.xpose.msra.mxu0 %v194
        %217 = vmatprep.subr.mxu0 0.0
        %218 = vmatpush1.xpose.msra.mxu0 %v195
        %219 = vmatprep.subr.mxu0 0.0
        %220 = vmatpush1.xpose.msra.mxu0 %v196
        %221 = vmatprep.subr.mxu0 0.0
        %222 = vmatpush1.xpose.msra.mxu0 %v197
        %223 = vmatprep.subr.mxu0 0.0
        %224 = vmatpush1.xpose.msra.mxu0 %v198
        %225 = vmatprep.subr.mxu0 0.0
        %226 = vmatpush1.xpose.msra.mxu0 %v199
        %227 = vmatprep.subr.mxu0 0.0
        %228 = vmatpush1.xpose.msra.mxu0 %v200
        %229 = vmatprep.subr.mxu0 0.0
        %230 = vmatpush1.xpose.msra.mxu0 %v201
        %231 = vmatprep.subr.mxu0 0.0
        %232 = vmatpush1.xpose.msra.mxu0 %v202
        %233 = vmatprep.subr.mxu0 0.0
        %234 = vmatpush1.xpose.msra.mxu0 %v203
        %235 = vmatprep.subr.mxu0 0.0
        %236 = vmatpush1.xpose.msra.mxu0 %v204
        %237 = vmatprep.subr.mxu0 0.0
        %238 = vmatpush1.xpose.msra.mxu0 %v205
        %239 = vmatprep.subr.mxu0 0.0
        %240 = vmatpush1.xpose.msra.mxu0 %v206
        %241 = vmatprep.subr.mxu0 0.0
        %242 = vmatpush1.xpose.msra.mxu0 %v207
        %243 = vmatprep.subr.mxu0 0.0
        %244 = vmatpush1.xpose.msra.mxu0 %v208
        %245 = vmatprep.subr.mxu0 0.0
        %246 = vmatpush1.xpose.msra.mxu0 %v209
        %247 = vmatprep.subr.mxu0 0.0
        %248 = vmatpush1.xpose.msra.mxu0 0.0
        %249 = vmatprep.subr.mxu0 0.0
        %250 = vmatpush1.xpose.msra.mxu0 0.0
        %251 = vmatprep.subr.mxu0 0.0
        %252 = vmatpush1.xpose.msra.mxu0 0.0
        %253 = vmatprep.subr.mxu0 0.0
        %254 = vmatpush1.xpose.msra.mxu0 0.0
        %255 = vmatprep.subr.mxu0 0.0
        %256 = vmatpush1.xpose.msra.mxu0 0.0
        %257 = vmatprep.subr.mxu0 0.0
        %258 = vmatpush1.xpose.msra.mxu0 0.0
        %259 = vmatprep.subr.mxu0 0.0
        %260 = vmatpush1.xpose.msra.mxu0 0.0
        %261 = vmatprep.subr.mxu0 0.0
        %262 = vmatpush1.xpose.msra.mxu0 0.0
        %263 = vmatprep.subr.mxu0 0.0
        %264 = vmatpush1.xpose.msra.mxu0 0.0
        %265 = vmatprep.subr.mxu0 0.0
        %266 = vmatpush1.xpose.msra.mxu0 0.0
        %267 = vmatprep.subr.mxu0 0.0
        %268 = vmatpush1.xpose.msra.mxu0 0.0
        %269 = vmatprep.subr.mxu0 0.0
        %270 = vmatpush1.xpose.msra.mxu0 0.0
        %271 = vmatprep.subr.mxu0 0.0
        %272 = vmatpush1.xpose.msra.mxu0 0.0
        %273 = vmatprep.subr.mxu0 0.0
        %274 = vmatpush1.xpose.msra.mxu0 0.0
        %275 = vmatprep.subr.mxu0 0.0
        %276 = vmatpush1.xpose.msra.mxu0 0.0
        %277 = vmatprep.subr.mxu0 0.0
        %278 = vmatpush1.xpose.msra.mxu0 0.0
        %279 = vmatprep.mubr.f32.mxu0 0.0
        %280 = vmatmul.mubr.f32.gmra.mrb[0].mxu0 %v192
        %v281 = vpop.f32.mrb[0].mxu0
        %v282 = vadd.f32 %v213, %v281
        %v283 = vpop.f32.mrb[0].mxu0
        %284 = vdwg.mxu0
        %285 = vmax.xlane.f32.xlu0 %v282
        %v286 = vpop.xlane.xlu0 %285
        %v287 = vsub.f32 %v282, %v286
        %v288 = vmul.f32 %v287, 1.442695
        %v289 = vpow.pop %v288
        %290 = vadd.xlane.f32.xlu0 %v289
        %v291 = vpop.xlane.xlu0 %290
        %v292 = vrcp.pop %v291
        %v293 = vmul.f32 %v289, %v292
        %294 = vst [vmem:[%s189] sm:$0xff] %v293
        %s295 = scalar_lea.vmem %s167, 128 [#allocation2]
        %v296 = vld [vmem:[%s295] sm:$0xff]
        %v297 = vld [vmem:[%s295 + $0x8] sm:$0xff]
        %v298 = vld [vmem:[%s295 + $0x10] sm:$0xff]
        %v299 = vld [vmem:[%s295 + $0x18] sm:$0xff]
        %v300 = vld [vmem:[%s295 + $0x20] sm:$0xff]
        %v301 = vld [vmem:[%s295 + $0x28] sm:$0xff]
        %v302 = vld [vmem:[%s295 + $0x30] sm:$0xff]
        %v303 = vld [vmem:[%s295 + $0x38] sm:$0xff]
        %v304 = vld [vmem:[%s295 + $0x40] sm:$0xff]
        %v305 = vld [vmem:[%s295 + $0x48] sm:$0xff]
        %v306 = vld [vmem:[%s295 + $0x50] sm:$0xff]
        %v307 = vld [vmem:[%s295 + $0x58] sm:$0xff]
        %v308 = vld [vmem:[%s295 + $0x60] sm:$0xff]
        %v309 = vld [vmem:[%s295 + $0x68] sm:$0xff]
        %v310 = vld [vmem:[%s295 + $0x70] sm:$0xff]
        %v311 = vld [vmem:[%s295 + $0x78] sm:$0xff]
        %312 = vmatprep.subr.mxu0 0.0
        %313 = vmatpush1.xpose.msra.mxu0 %v296
        %314 = vmatprep.subr.mxu0 0.0
        %315 = vmatpush1.xpose.msra.mxu0 %v297
        %316 = vmatprep.subr.mxu0 0.0
        %317 = vmatpush1.xpose.msra.mxu0 %v298
        %318 = vmatprep.subr.mxu0 0.0
        %319 = vmatpush1.xpose.msra.mxu0 %v299
        %320 = vmatprep.subr.mxu0 0.0
        %321 = vmatpush1.xpose.msra.mxu0 %v300
        %322 = vmatprep.subr.mxu0 0.0
        %323 = vmatpush1.xpose.msra.mxu0 %v301
        %324 = vmatprep.subr.mxu0 0.0
        %325 = vmatpush1.xpose.msra.mxu0 %v302
        %326 = vmatprep.subr.mxu0 0.0
        %327 = vmatpush1.xpose.msra.mxu0 %v303
        %328 = vmatprep.subr.mxu0 0.0
        %329 = vmatpush1.xpose.msra.mxu0 %v304
        %330 = vmatprep.subr.mxu0 0.0
        %331 = vmatpush1.xpose.msra.mxu0 %v305
        %332 = vmatprep.subr.mxu0 0.0
        %333 = vmatpush1.xpose.msra.mxu0 %v306
        %334 = vmatprep.subr.mxu0 0.0
        %335 = vmatpush1.xpose.msra.mxu0 %v307
        %336 = vmatprep.subr.mxu0 0.0
        %337 = vmatpush1.xpose.msra.mxu0 %v308
        %338 = vmatprep.subr.mxu0 0.0
        %339 = vmatpush1.xpose.msra.mxu0 %v309
        %340 = vmatprep.subr.mxu0 0.0
        %341 = vmatpush1.xpose.msra.mxu0 %v310
        %342 = vmatprep.subr.mxu0 0.0
        %343 = vmatpush1.xpose.msra.mxu0 %v311
        %344 = vmatprep.subr.mxu0 0.0
        %345 = vmatpush1.xpose.msra.mxu0 0.0
        %346 = vmatprep.subr.mxu0 0.0
        %347 = vmatpush1.xpose.msra.mxu0 0.0
        %348 = vmatprep.subr.mxu0 0.0
        %349 = vmatpush1.xpose.msra.mxu0 0.0
        %350 = vmatprep.subr.mxu0 0.0
        %351 = vmatpush1.xpose.msra.mxu0 0.0
        %352 = vmatprep.subr.mxu0 0.0
        %353 = vmatpush1.xpose.msra.mxu0 0.0
        %354 = vmatprep.subr.mxu0 0.0
        %355 = vmatpush1.xpose.msra.mxu0 0.0
        %356 = vmatprep.subr.mxu0 0.0
        %357 = vmatpush1.xpose.msra.mxu0 0.0
        %358 = vmatprep.subr.mxu0 0.0
        %359 = vmatpush1.xpose.msra.mxu0 0.0
        %360 = vmatprep.subr.mxu0 0.0
        %361 = vmatpush1.xpose.msra.mxu0 0.0
        %362 = vmatprep.subr.mxu0 0.0
        %363 = vmatpush1.xpose.msra.mxu0 0.0
        %364 = vmatprep.subr.mxu0 0.0
        %365 = vmatpush1.xpose.msra.mxu0 0.0
        %366 = vmatprep.subr.mxu0 0.0
        %367 = vmatpush1.xpose.msra.mxu0 0.0
        %368 = vmatprep.subr.mxu0 0.0
        %369 = vmatpush1.xpose.msra.mxu0 0.0
        %370 = vmatprep.subr.mxu0 0.0
        %371 = vmatpush1.xpose.msra.mxu0 0.0
        %372 = vmatprep.subr.mxu0 0.0
        %373 = vmatpush1.xpose.msra.mxu0 0.0
        %374 = vmatprep.subr.mxu0 0.0
        %375 = vmatpush1.xpose.msra.mxu0 0.0
        %376 = vmatprep.mubr.f32.mxu0 0.0
        %377 = vmatmul.mubr.f32.gmra.mrb[0].mxu0 %v192
        %v378 = vpop.f32.mrb[0].mxu0
        %v379 = vadd.f32 %v213, %v378
        %v380 = vpop.f32.mrb[0].mxu0
        %381 = vdwg.mxu0
        %382 = vmax.xlane.f32.xlu0 %v379
        %v383 = vpop.xlane.xlu0 %382
        %v384 = vsub.f32 %v379, %v383
        %v385 = vmul.f32 %v384, 1.442695
        %v386 = vpow.pop %v385
        %387 = vadd.xlane.f32.xlu0 %v386
        %v388 = vpop.xlane.xlu0 %387
        %v389 = vrcp.pop %v388
        %v390 = vmul.f32 %v386, %v389
        %s391 = scalar_lea.vmem %s189, 8 [#allocation5]
        %392 = vst [vmem:[%s391] sm:$0xff] %v390
        %s393 = sand.u32 %s96, 1
        %s394 = scalar_lea.sflag [#allocation4], %s393
        %s395 = sand.u32 %s96, 1
        %s396 = smul.addr %s395, 16
        %s397 = scalar_lea.vmem [#allocation5], %s396
        // Predicated region
        $region37: #{tpu_custom_call.1} parent=31 // pred_check
          %p398 = pneg %p106
        $region38: #{tpu_custom_call.1} parent=31 // pred_check_branch
          %400 = sbr.rel (%p398) target = $region40
        $region39: #{tpu_custom_call.1} parent=31 // pred_region
          %s401 = smul.u32 2, %s20
          %s403 = ssub.s32 256, 256
          %404 = vsyncadd %s394, %s403
          %s405 = smul.addr %s401, 128
          %s406 = scalar_lea.hbm %s3, %s405
          %s407 = sshll.u32 %s397, 4
          %s408 = int_to_ptr.vmem [resolvable:$true] %s407
          %413 = dma.vmem_to_hbm [thread:$0]  %s408, 256, %s406, %s394, 128, 128, 8
        $region40: #{tpu_custom_call.1} parent=31 // pred_fallthru
          _
      $region32: #{tpu_custom_call.1} parent=5 // pred_fallthru
        _
      %p414 = scmp.le.s32.totalorder 2, %s15
      // Predicated region
      $region41: #{tpu_custom_call.1} parent=5 // pred_check
        %p415 = pneg %p414
      $region42: #{tpu_custom_call.1} parent=5 // pred_check_branch
        %417 = sbr.rel (%p415) target = $region44
      $region43: #{tpu_custom_call.1} parent=5 // pred_region
        %s418 = ssub.s32 %s15, 2
        // Predicated region
        $region45: #{tpu_custom_call.1} parent=43 // pred_check
          %p419 = pneg %p112
        $region46: #{tpu_custom_call.1} parent=43 // pred_check_branch
          %421 = sbr.rel (%p419) target = $region48
        $region47: #{tpu_custom_call.1} parent=43 // pred_region
          %s422 = sand.u32 %s97, 1
          %s423 = scalar_lea.sflag [#allocation4], %s422
          %s424 = sand.u32 %s97, 1
          %s425 = smul.addr %s424, 16
          %s426 = scalar_lea.vmem [#allocation5], %s425
          %427 = dma.done %s423, 256
        $region48: #{tpu_custom_call.1} parent=43 // pred_fallthru
          _
      $region44: #{tpu_custom_call.1} parent=5 // pred_fallthru
        _
    $region6: #{tpu_custom_call.1} parent=1 // loop_footer
      %s19 = sadd.s32 1, %s15
    $region7: #{tpu_custom_call.1} parent=1 // loop_footer_branch
      %14 = sbr.rel target = $region3
    $region8: #{tpu_custom_call.1} parent=1 // loop_exit
      _
    %428 = vsyncpa [#allocation3], 1
    %s429 = scalar_lea.sflag [#allocation3], 1
    %430 = vsyncpa %s429, 1
    %431 = vsyncpa [#allocation4], 1
    %s432 = scalar_lea.sflag [#allocation4], 1
    %433 = vsyncpa %s432, 1

</llo_original>
